<compile_context>
chip_gen: v6e
topology: v6e:2x2x1
jax: 0.10.0
libtpu: 0.0.40
codegen_flags: <defaults>
</compile_context>

<pallas_src>
import jax
import jax.numpy as jnp
from jax.experimental import pallas as pl
from jax.experimental.pallas import tpu as pltpu

P = 0.3
MASK_RATIO = 0.2
_LANES = 128
# keep iff bits > threshold  =>  P(keep) = 1 - mask_ratio  (matches rand > mask_ratio)
_KEEP_THRESHOLD = int(MASK_RATIO * (1 << 32))


def random_mask_kernel(bits_ref, x_ref, o_ref):
    keep = bits_ref[...] > jnp.uint32(_KEEP_THRESHOLD)
    o_ref[...] = jnp.where(keep, x_ref[...], jnp.zeros_like(x_ref[...]))


def _masked_pallas(x, key):
    """Apply the element mask to x via a Pallas kernel (lane-dense layout)."""
    orig_shape = x.shape
    n = x.size
    pad = (-n) % _LANES
    flat = x.reshape(-1)
    if pad:
        flat = jnp.concatenate([flat, jnp.zeros((pad,), dtype=x.dtype)])
    xt = flat.reshape(-1, _LANES)  # (25, 128) for the (32, 100) input

    # Random bits only for the lane-dense view (no bits for nonexistent padding
    # beyond the 128-multiple); drawn in the wrapper so the kernel has no
    # TPU-only PRNG primitives.
    bits = jax.random.bits(key, xt.shape, dtype=jnp.uint32)

    out = pl.pallas_call(
        random_mask_kernel,
        out_shape=jax.ShapeDtypeStruct(xt.shape, x.dtype),
        in_specs=[
            pl.BlockSpec(memory_space=pltpu.MemorySpace.VMEM),  # bits
            pl.BlockSpec(memory_space=pltpu.MemorySpace.VMEM),  # x
        ],
        out_specs=pl.BlockSpec(memory_space=pltpu.MemorySpace.VMEM),
    )(bits, xt)

    return out.reshape(-1)[:n].reshape(orig_shape)


@jax.jit
def random_mask(x, key, apply_flag):
    """x: (N, F) float32; key: jax PRNG key; apply_flag: int32 (0/1), traced."""

    def apply_branch(operands):
        xx, kk = operands
        return _masked_pallas(xx, kk)

    def identity_branch(operands):
        xx, _ = operands
        return xx

    # Gate the whole masked path (PRNG draw + kernel launch) on the p=0.3 flag.
    return jax.lax.cond(apply_flag == 1, apply_branch, identity_branch, (x, key))


# TODO(synk): if this is ever used on large inputs, add a 1-D "parallel" grid
# over rows with lane-dense tiles and fold the tile index into the PRNG key.

if __name__ == "__main__":
    key = jax.random.PRNGKey(0)
    kx, kbranch, kmask = jax.random.split(key, 3)

    # Input matching the reference: torch.randn(32, 100)
    x = jax.random.normal(kx, (32, 100), dtype=jnp.float32)

    # Host-level "if random.random() < p" decision, deterministic via PRNGKey,
    # passed as a traced scalar so the branch is evaluated per call.
    branch_u = jax.random.uniform(kbranch, ())
    apply_flag = (branch_u < P).astype(jnp.int32)

    out = random_mask(x, kmask, apply_flag)
    out = jax.block_until_ready(out)

    # Sanity checks: shape/dtype preserved; every element is either kept or zeroed.
    assert out.shape == x.shape and out.dtype == x.dtype
    same_or_zero = jnp.logical_or(out == x, out == 0.0)
    assert bool(jnp.all(same_or_zero))

    # Also exercise the identity branch explicitly.
    out_id = jax.block_until_ready(random_mask(x, kmask, jnp.int32(0)))
    assert bool(jnp.all(out_id == x))

    print("KERNEL_OK")
</pallas_src>

<mosaic_0001>
module attributes {stable_mosaic.version = 11 : i64} {
  func.func @random_mask_kernel(%arg0: memref<25x128xi32, #tpu.memory_space<vmem>>, %arg1: memref<25x128xf32, #tpu.memory_space<vmem>>, %arg2: memref<25x128xf32, #tpu.memory_space<vmem>>) attributes {dimension_semantics = [], scalar_prefetch = 0 : i64, scratch_operands = 0 : i64, tpu.core_type = #tpu.core_type<tc>} {
    %c0 = arith.constant 0 : index
    %c0_0 = arith.constant 0 : index
    %0 = vector.load %arg0[%c0, %c0_0] : memref<25x128xi32, #tpu.memory_space<vmem>>, vector<25x128xi32>
    %c858993459_i32 = arith.constant 858993459 : i32
    %1 = vector.broadcast %c858993459_i32 : i32 to vector<25x128xi32>
    %2 = arith.cmpi ugt, %0, %1 : vector<25x128xi32>
    %c0_1 = arith.constant 0 : index
    %c0_2 = arith.constant 0 : index
    %3 = vector.load %arg1[%c0_1, %c0_2] : memref<25x128xf32, #tpu.memory_space<vmem>>, vector<25x128xf32>
    %cst = arith.constant 0.000000e+00 : f32
    %4 = vector.broadcast %cst : f32 to vector<25x128xf32>
    %5 = arith.select %2, %3, %4 : vector<25x128xi1>, vector<25x128xf32>
    %c0_3 = arith.constant 0 : index
    %c0_4 = arith.constant 0 : index
    %6 = vector.load %arg2[%c0_3, %c0_4] : memref<25x128xf32, #tpu.memory_space<vmem>>, vector<25x128xf32>
    tpu.vector_store %arg2[%c0_3, %c0_4], %5 {strides = array<i32>} : memref<25x128xf32, #tpu.memory_space<vmem>>, vector<25x128xf32>,
    return
  }
}

</mosaic_0001>

<llo_original>
// kernel: branch_1_fun.1
$region0: #{branch_1_fun.1}
  #allocation0 [shape = 'u32[]', space=smem, size = 0x4, offset = 0x4, fixed_abs, tag = 'smem constant byte address 0x4 - core index']
  #allocation1 [shape = 'u32[144,128]{1,0:T(1,128)}', space=vmem, size = 0x12000, scoped, tag = 'internal scratch']
  %s0 = inlined_call_operand.vmem [shape: u32[25,128], index: 0, kind: input, shape index: {}]
  %s1 = inlined_call_operand.vmem [shape: f32[25,128], index: 1, kind: input, shape index: {}]
  %s2 = inlined_call_operand.vmem [shape: f32[25,128], index: 2, kind: output, shape index: {}]
  %s3 = sld [smem:[#allocation0]]
  $region18: #{branch_1_fun.1} parent=0
    _
  %s5 = ssub.s32 1, %s3
  %s6 = scalar_select 0, %s5, %s3
  // Predicated region
  $region2: #{branch_1_fun.1} parent=0 // pred_check
    _
  $region3: #{branch_1_fun.1} parent=0 // pred_check_branch
    %8 = sbr.rel (0) target = $region5
  $region4: #{branch_1_fun.1} parent=0 // pred_region
    _
  $region5: #{branch_1_fun.1} parent=0 // pred_fallthru
    _
  // Predicated region
  $region6: #{branch_1_fun.1} parent=0 // pred_check
    _
  $region7: #{branch_1_fun.1} parent=0 // pred_check_branch
    %10 = sbr.rel (0) target = $region9
  $region8: #{branch_1_fun.1} parent=0 // pred_region
    _
  $region9: #{branch_1_fun.1} parent=0 // pred_fallthru
    _
  %v11 = vld [vmem:[%s0] sm:$0xff]
  %v12 = vld [vmem:[%s0 + $0x8] sm:$0xff]
  %v13 = vld [vmem:[%s0 + $0x10] sm:$0xff]
  %v14 = vld [vmem:[%s0 + $0x18] sm:$0x1]
  %vm15 = vcmp.gt.u32.totalorder %v11, 858993459
  %vm16 = vcmp.gt.u32.totalorder %v12, 858993459
  %vm17 = vcmp.gt.u32.totalorder %v13, 858993459
  %vm18 = vcmp.gt.u32.totalorder %v14, 858993459
  %v19 = vld [vmem:[%s1] sm:$0xff]
  %v20 = vld [vmem:[%s1 + $0x8] sm:$0xff]
  %v21 = vld [vmem:[%s1 + $0x10] sm:$0xff]
  %v22 = vld [vmem:[%s1 + $0x18] sm:$0x1]
  %v23 = vsel %vm15, %v19, 0.0
  %v24 = vsel %vm16, %v20, 0.0
  %v25 = vsel %vm17, %v21, 0.0
  %v26 = vsel %vm18, %v22, 0.0
  %27 = vst [vmem:[%s2] sm:$0xff] %v23
  %28 = vst [vmem:[%s2 + $0x8] sm:$0xff] %v24
  %29 = vst [vmem:[%s2 + $0x10] sm:$0xff] %v25
  %30 = vst [vmem:[%s2 + $0x18] sm:$0x1] %v26
  // Predicated region
  $region10: #{branch_1_fun.1} parent=0 // pred_check
    _
  $region11: #{branch_1_fun.1} parent=0 // pred_check_branch
    %32 = sbr.rel (0) target = $region13
  $region12: #{branch_1_fun.1} parent=0 // pred_region
    _
  $region13: #{branch_1_fun.1} parent=0 // pred_fallthru
    _
  // Predicated region
  $region14: #{branch_1_fun.1} parent=0 // pred_check
    _
  $region15: #{branch_1_fun.1} parent=0 // pred_check_branch
    %34 = sbr.rel (0) target = $region17
  $region16: #{branch_1_fun.1} parent=0 // pred_region
    _
  $region17: #{branch_1_fun.1} parent=0 // pred_fallthru
    _

</llo_original>
